<compile_context>
chip_gen: v6e
topology: v6e:2x2x1
jax: 0.10.0
libtpu: 0.0.40
codegen_flags: <defaults>
</compile_context>

<pallas_src>
import functools

import jax
import jax.numpy as jnp
from jax import lax
from jax.experimental import pallas as pl
from jax.experimental.pallas import tpu as pltpu


def _conv_abs_kernel(w_ref, b_ref, mask_ref, x_ref, o_ref, *, W_img, K):
    """One (batch, channel-block) step of the grouped |W| convolution.

    w_ref:    VMEM (rows, K*K)      raw weights, row o = c*m + j (abs in-kernel)
    b_ref:    VMEM (rows, 1)        bias
    mask_ref: VMEM (K*K, HWp)       per-tap validity mask (1.0 in-bounds, 0.0 OOB/pad)
    x_ref:    VMEM (1, rows, HWp)   channel-repeated input planes (row o -> channel o//m)
    o_ref:    VMEM (1, rows, HWp)   output planes, spatially flattened
    """
    rows, HWp = o_ref.shape[1], o_ref.shape[2]
    pad = K // 2

    # Hoisted out of the tap loop: one f32 cast of the input block, |weight|,
    # and the bias that seeds the accumulator.
    x = x_ref[0].astype(jnp.float32)                         # (rows, HWp)
    w_abs = jnp.abs(w_ref[...]).astype(jnp.float32)          # (rows, K*K)
    acc = jnp.broadcast_to(b_ref[...].astype(jnp.float32), (rows, HWp))

    for dy in range(K):
        for dx in range(K):
            off = (dy - pad) * W_img + (dx - pad)
            tap = dy * K + dx
            # shifted[p] == x[p + off]; lanes that wrap are exactly the taps the
            # precomputed mask zeroes. pltpu.roll uses the XLU slot and
            # co-issues with the per-tap VALU MACs.
            shifted = x if off == 0 else pltpu.roll(x, (-off) % HWp, axis=1)
            contrib = shifted * mask_ref[tap:tap + 1, :]      # (rows, HWp)
            acc = acc + w_abs[:, tap:tap + 1] * contrib
    o_ref[0] = acc.astype(o_ref.dtype)


def _vmem_capacity_bytes():
    try:
        return int(pltpu.get_tpu_info().vmem_capacity_bytes)
    except Exception:
        return 64 * 1024 * 1024   # conservative: v7x per-TensorCore capacity


def _pick_c_block(C, m, HWp, itemsize, *, n_batch, dma_budget_bytes,
                  acc_budget_bytes=128 * 1024):
    """Largest divisor of C whose block fits both the DMA budget (double-buffered
    HBM traffic) and the live f32 accumulator budget (vreg pressure), subject to
    the (8,128) sublane-tiling constraint (c_block*m % 8 == 0 unless the block is
    the full C), and keeping >= 2 grid steps for v7x's two TensorCores when a
    smaller divisor exists."""
    dma_per_c = 2 * m * HWp * itemsize        # repeated-input rows + output rows
    acc_per_c = m * HWp * 4                   # live f32 accumulator rows
    max_cb = max(1, min(dma_budget_bytes // dma_per_c,
                        acc_budget_bytes // acc_per_c))
    cands = [d for d in range(1, C + 1)
             if C % d == 0 and (d == C or (d * m) % 8 == 0)]
    fitting = [d for d in cands if d <= max_cb]
    c_blk = max(fitting) if fitting else min(cands)
    if n_batch * (C // c_blk) < 2:            # keep both v7x TensorCores busy
        smaller = [d for d in cands if d < c_blk]
        if smaller:
            within = [d for d in smaller if d <= max_cb]
            c_blk = max(within) if within else max(smaller)
    return c_blk


def conv_abs(x, weight, bias=None, *, kernel_size=5, c_block=None):
    """x: (N, C, H, W); weight: (O, 1, K, K) with groups=C (O % C == 0); bias: (O,)."""
    N, C, H, W = x.shape
    O = weight.shape[0]
    K = kernel_size
    assert K % 2 == 1, "padding = K//2 matches PyTorch output size only for odd K"
    assert O % C == 0, "grouped conv with groups=in_channel requires O % C == 0"
    m = O // C
    HW = H * W
    HWp = ((HW + 127) // 128) * 128           # lane-dense (128-multiple) spatial axis
    pad = K // 2

    if bias is None:
        bias = jnp.zeros((O,), x.dtype)

    # Layout plumbing (wrapper-side, cheap vs. the VALU-bound 25-tap loop):
    #   x      -> (N, O, HWp): spatially flattened, zero-padded to a 128-lane
    #             multiple, channel-repeated so row o = c*m + j holds channel c.
    #   weight -> (O, K*K), bias -> (O, 1): one dense sublane row per output chan.
    x_flat = x.reshape(N, C, HW)
    if HWp != HW:
        x_flat = jnp.pad(x_flat, ((0, 0), (0, 0), (0, HWp - HW)))
    x_rep = jnp.repeat(x_flat, m, axis=1) if m > 1 else x_flat   # (N, O, HWp)
    w_flat = weight.reshape(O, K * K)
    b_flat = bias.reshape(O, 1)

    # Precomputed per-tap "same"-padding validity masks over the flattened plane.
    p = jnp.arange(HWp, dtype=jnp.int32)
    row, col = p // W, p % W
    mask_rows = []
    for dy in range(K):
        for dx in range(K):
            oy, ox = dy - pad, dx - pad
            mask_rows.append((p < HW) & (row + oy >= 0) & (row + oy < H)
                             & (col + ox >= 0) & (col + ox < W))
    mask = jnp.stack(mask_rows).astype(jnp.float32)               # (K*K, HWp)

    itemsize = jnp.dtype(x.dtype).itemsize
    vmem_cap = _vmem_capacity_bytes()
    dma_budget = (8 * 1024 * 1024 if vmem_cap <= 64 * 1024 * 1024
                  else 16 * 1024 * 1024)      # bigger blocks on 128 MiB v5e/v6e
    if c_block is None:
        c_block = _pick_c_block(C, m, HWp, itemsize, n_batch=N,
                                dma_budget_bytes=dma_budget)
    assert C % c_block == 0
    n_cblk = C // c_block
    rows = c_block * m

    block_bytes = 2 * rows * HWp * itemsize   # one in + one out block
    vmem_limit = int(min(vmem_cap // 2,
                         max(16 * 1024 * 1024, 8 * block_bytes)))

    kernel = functools.partial(_conv_abs_kernel, W_img=W, K=K)

    out = pl.pallas_call(
        kernel,
        out_shape=jax.ShapeDtypeStruct((N, O, HWp), x.dtype),
        grid=(N, n_cblk),
        in_specs=[
            pl.BlockSpec((rows, K * K), lambda n, g: (g, 0)),
            pl.BlockSpec((rows, 1), lambda n, g: (g, 0)),
            pl.BlockSpec((K * K, HWp), lambda n, g: (0, 0)),
            pl.BlockSpec((1, rows, HWp), lambda n, g: (n, g, 0)),
        ],
        out_specs=pl.BlockSpec((1, rows, HWp), lambda n, g: (n, g, 0)),
        compiler_params=pltpu.CompilerParams(
            dimension_semantics=("parallel", "parallel"),
            vmem_limit_bytes=vmem_limit),
    )(w_flat, b_flat, mask, x_rep)

    # (N, O, HWp) -> crop padded lanes -> (N, O, H, W) (metadata reshape).
    return out[:, :, :HW].reshape(N, O, H, W)


def conv_abs_reference(x, weight, bias, *, kernel_size=5):
    """Pure-JAX reference matching F.conv2d(I, |W|, b, groups=C)."""
    K = kernel_size
    p = K // 2
    out = lax.conv_general_dilated(
        x, jnp.abs(weight),
        window_strides=(1, 1),
        padding=((p, p), (p, p)),
        dimension_numbers=("NCHW", "OIHW", "NCHW"),
        feature_group_count=x.shape[1])
    return out + bias[None, :, None, None]


if __name__ == "__main__":
    # Small deterministic setup: batch=2, in_channel=4, out_channel=8 (multiplier 2),
    # spatial 16x16, kernel_size=5.
    N, C, O, H, W, K = 2, 4, 8, 16, 16, 5

    key = jax.random.PRNGKey(0)
    kx, kw, kb = jax.random.split(key, 3)
    x = jax.random.normal(kx, (N, C, H, W), dtype=jnp.float32)
    weight = jax.random.normal(kw, (O, 1, K, K), dtype=jnp.float32) * 0.1
    bias = jax.random.normal(kb, (O,), dtype=jnp.float32) * 0.01

    out = jax.block_until_ready(conv_abs(x, weight, bias, kernel_size=K))
    ref = conv_abs_reference(x, weight, bias, kernel_size=K)

    max_err = float(jnp.max(jnp.abs(out - ref)))
    assert out.shape == (N, O, H, W), out.shape
    assert max_err < 1e-4, f"mismatch vs reference: {max_err}"
    print("KERNEL_OK")
</pallas_src>

<mosaic_0001>
module attributes {stable_mosaic.version = 11 : i64} {
  func.func @_conv_abs_kernel(%arg0: i32, %arg1: i32, %arg2: memref<8x25xf32, #tpu.memory_space<vmem>>, %arg3: memref<8x1xf32, #tpu.memory_space<vmem>>, %arg4: memref<25x256xf32, #tpu.memory_space<vmem>>, %arg5: memref<1x8x256xf32, #tpu.memory_space<vmem>>, %arg6: memref<1x8x256xf32, #tpu.memory_space<vmem>>) attributes {dimension_semantics = [#tpu.dimension_semantics<parallel>, #tpu.dimension_semantics<parallel>], iteration_bounds = array<i64: 2, 1>, scalar_prefetch = 0 : i64, scratch_operands = 0 : i64, tpu.core_type = #tpu.core_type<tc>, window_params = [{transform_indices = @transform_0, window_bounds = array<i64: 8, 25>}, {transform_indices = @transform_1, window_bounds = array<i64: 8, 1>}, {pipeline_mode = #tpu.pipeline_mode<synchronous>, transform_indices = @transform_2, window_bounds = array<i64: 25, 256>}, {transform_indices = @transform_3, window_bounds = array<i64: 1, 8, 256>}, {transform_indices = @transform_4, window_bounds = array<i64: 1, 8, 256>}]} {
    %c0 = arith.constant 0 : index
    %c0_0 = arith.constant 0 : index
    %c0_1 = arith.constant 0 : index
    %0 = vector.load %arg5[%c0, %c0_0, %c0_1] : memref<1x8x256xf32, #tpu.memory_space<vmem>>, vector<1x8x256xf32>
    %1 = vector.shape_cast %0 : vector<1x8x256xf32> to vector<8x256xf32>
    %c0_2 = arith.constant 0 : index
    %c0_3 = arith.constant 0 : index
    %2 = vector.load %arg2[%c0_2, %c0_3] : memref<8x25xf32, #tpu.memory_space<vmem>>, vector<8x25xf32>
    %3 = math.absf %2 : vector<8x25xf32>
    %c0_4 = arith.constant 0 : index
    %c0_5 = arith.constant 0 : index
    %4 = vector.load %arg3[%c0_4, %c0_5] : memref<8x1xf32, #tpu.memory_space<vmem>>, vector<8x1xf32>
    %5 = vector.shape_cast %4 : vector<8x1xf32> to vector<8x1xf32>
    %6 = vector.broadcast %5 : vector<8x1xf32> to vector<8x256xf32>
    %c34_i32 = arith.constant 34 : i32
    %7 = tpu.dynamic_rotate %1 by %c34_i32 dim 1 : vector<8x256xf32>, i32 -> vector<8x256xf32>
    %c0_6 = arith.constant 0 : index
    %c0_7 = arith.constant 0 : index
    %8 = vector.load %arg4[%c0_6, %c0_7] : memref<25x256xf32, #tpu.memory_space<vmem>>, vector<1x256xf32>
    %9 = vector.broadcast %8 : vector<1x256xf32> to vector<8x256xf32>
    %10 = arith.mulf %7, %9 : vector<8x256xf32>
    %11 = vector.extract_strided_slice %3 {offsets = [0, 0], sizes = [8, 1], strides = [1, 1]} : vector<8x25xf32> to vector<8x1xf32>
    %12 = vector.broadcast %11 : vector<8x1xf32> to vector<8x256xf32>
    %13 = arith.mulf %12, %10 : vector<8x256xf32>
    %14 = arith.addf %6, %13 : vector<8x256xf32>
    %c33_i32 = arith.constant 33 : i32
    %15 = tpu.dynamic_rotate %1 by %c33_i32 dim 1 : vector<8x256xf32>, i32 -> vector<8x256xf32>
    %c1 = arith.constant 1 : index
    %c0_8 = arith.constant 0 : index
    %16 = vector.load %arg4[%c1, %c0_8] : memref<25x256xf32, #tpu.memory_space<vmem>>, vector<1x256xf32>
    %17 = vector.broadcast %16 : vector<1x256xf32> to vector<8x256xf32>
    %18 = arith.mulf %15, %17 : vector<8x256xf32>
    %19 = vector.extract_strided_slice %3 {offsets = [0, 1], sizes = [8, 1], strides = [1, 1]} : vector<8x25xf32> to vector<8x1xf32>
    %20 = vector.broadcast %19 : vector<8x1xf32> to vector<8x256xf32>
    %21 = arith.mulf %20, %18 : vector<8x256xf32>
    %22 = arith.addf %14, %21 : vector<8x256xf32>
    %c32_i32 = arith.constant 32 : i32
    %23 = tpu.dynamic_rotate %1 by %c32_i32 dim 1 : vector<8x256xf32>, i32 -> vector<8x256xf32>
    %c2 = arith.constant 2 : index
    %c0_9 = arith.constant 0 : index
    %24 = vector.load %arg4[%c2, %c0_9] : memref<25x256xf32, #tpu.memory_space<vmem>>, vector<1x256xf32>
    %25 = vector.broadcast %24 : vector<1x256xf32> to vector<8x256xf32>
    %26 = arith.mulf %23, %25 : vector<8x256xf32>
    %27 = vector.extract_strided_slice %3 {offsets = [0, 2], sizes = [8, 1], strides = [1, 1]} : vector<8x25xf32> to vector<8x1xf32>
    %28 = vector.broadcast %27 : vector<8x1xf32> to vector<8x256xf32>
    %29 = arith.mulf %28, %26 : vector<8x256xf32>
    %30 = arith.addf %22, %29 : vector<8x256xf32>
    %c31_i32 = arith.constant 31 : i32
    %31 = tpu.dynamic_rotate %1 by %c31_i32 dim 1 : vector<8x256xf32>, i32 -> vector<8x256xf32>
    %c3 = arith.constant 3 : index
    %c0_10 = arith.constant 0 : index
    %32 = vector.load %arg4[%c3, %c0_10] : memref<25x256xf32, #tpu.memory_space<vmem>>, vector<1x256xf32>
    %33 = vector.broadcast %32 : vector<1x256xf32> to vector<8x256xf32>
    %34 = arith.mulf %31, %33 : vector<8x256xf32>
    %35 = vector.extract_strided_slice %3 {offsets = [0, 3], sizes = [8, 1], strides = [1, 1]} : vector<8x25xf32> to vector<8x1xf32>
    %36 = vector.broadcast %35 : vector<8x1xf32> to vector<8x256xf32>
    %37 = arith.mulf %36, %34 : vector<8x256xf32>
    %38 = arith.addf %30, %37 : vector<8x256xf32>
    %c30_i32 = arith.constant 30 : i32
    %39 = tpu.dynamic_rotate %1 by %c30_i32 dim 1 : vector<8x256xf32>, i32 -> vector<8x256xf32>
    %c4 = arith.constant 4 : index
    %c0_11 = arith.constant 0 : index
    %40 = vector.load %arg4[%c4, %c0_11] : memref<25x256xf32, #tpu.memory_space<vmem>>, vector<1x256xf32>
    %41 = vector.broadcast %40 : vector<1x256xf32> to vector<8x256xf32>
    %42 = arith.mulf %39, %41 : vector<8x256xf32>
    %43 = vector.extract_strided_slice %3 {offsets = [0, 4], sizes = [8, 1], strides = [1, 1]} : vector<8x25xf32> to vector<8x1xf32>
    %44 = vector.broadcast %43 : vector<8x1xf32> to vector<8x256xf32>
    %45 = arith.mulf %44, %42 : vector<8x256xf32>
    %46 = arith.addf %38, %45 : vector<8x256xf32>
    %c18_i32 = arith.constant 18 : i32
    %47 = tpu.dynamic_rotate %1 by %c18_i32 dim 1 : vector<8x256xf32>, i32 -> vector<8x256xf32>
    %c5 = arith.constant 5 : index
    %c0_12 = arith.constant 0 : index
    %48 = vector.load %arg4[%c5, %c0_12] : memref<25x256xf32, #tpu.memory_space<vmem>>, vector<1x256xf32>
    %49 = vector.broadcast %48 : vector<1x256xf32> to vector<8x256xf32>
    %50 = arith.mulf %47, %49 : vector<8x256xf32>
    %51 = vector.extract_strided_slice %3 {offsets = [0, 5], sizes = [8, 1], strides = [1, 1]} : vector<8x25xf32> to vector<8x1xf32>
    %52 = vector.broadcast %51 : vector<8x1xf32> to vector<8x256xf32>
    %53 = arith.mulf %52, %50 : vector<8x256xf32>
    %54 = arith.addf %46, %53 : vector<8x256xf32>
    %c17_i32 = arith.constant 17 : i32
    %55 = tpu.dynamic_rotate %1 by %c17_i32 dim 1 : vector<8x256xf32>, i32 -> vector<8x256xf32>
    %c6 = arith.constant 6 : index
    %c0_13 = arith.constant 0 : index
    %56 = vector.load %arg4[%c6, %c0_13] : memref<25x256xf32, #tpu.memory_space<vmem>>, vector<1x256xf32>
    %57 = vector.broadcast %56 : vector<1x256xf32> to vector<8x256xf32>
    %58 = arith.mulf %55, %57 : vector<8x256xf32>
    %59 = vector.extract_strided_slice %3 {offsets = [0, 6], sizes = [8, 1], strides = [1, 1]} : vector<8x25xf32> to vector<8x1xf32>
    %60 = vector.broadcast %59 : vector<8x1xf32> to vector<8x256xf32>
    %61 = arith.mulf %60, %58 : vector<8x256xf32>
    %62 = arith.addf %54, %61 : vector<8x256xf32>
    %c16_i32 = arith.constant 16 : i32
    %63 = tpu.dynamic_rotate %1 by %c16_i32 dim 1 : vector<8x256xf32>, i32 -> vector<8x256xf32>
    %c7 = arith.constant 7 : index
    %c0_14 = arith.constant 0 : index
    %64 = vector.load %arg4[%c7, %c0_14] : memref<25x256xf32, #tpu.memory_space<vmem>>, vector<1x256xf32>
    %65 = vector.broadcast %64 : vector<1x256xf32> to vector<8x256xf32>
    %66 = arith.mulf %63, %65 : vector<8x256xf32>
    %67 = vector.extract_strided_slice %3 {offsets = [0, 7], sizes = [8, 1], strides = [1, 1]} : vector<8x25xf32> to vector<8x1xf32>
    %68 = vector.broadcast %67 : vector<8x1xf32> to vector<8x256xf32>
    %69 = arith.mulf %68, %66 : vector<8x256xf32>
    %70 = arith.addf %62, %69 : vector<8x256xf32>
    %c15_i32 = arith.constant 15 : i32
    %71 = tpu.dynamic_rotate %1 by %c15_i32 dim 1 : vector<8x256xf32>, i32 -> vector<8x256xf32>
    %c8 = arith.constant 8 : index
    %c0_15 = arith.constant 0 : index
    %72 = vector.load %arg4[%c8, %c0_15] : memref<25x256xf32, #tpu.memory_space<vmem>>, vector<1x256xf32>
    %73 = vector.broadcast %72 : vector<1x256xf32> to vector<8x256xf32>
    %74 = arith.mulf %71, %73 : vector<8x256xf32>
    %75 = vector.extract_strided_slice %3 {offsets = [0, 8], sizes = [8, 1], strides = [1, 1]} : vector<8x25xf32> to vector<8x1xf32>
    %76 = vector.broadcast %75 : vector<8x1xf32> to vector<8x256xf32>
    %77 = arith.mulf %76, %74 : vector<8x256xf32>
    %78 = arith.addf %70, %77 : vector<8x256xf32>
    %c14_i32 = arith.constant 14 : i32
    %79 = tpu.dynamic_rotate %1 by %c14_i32 dim 1 : vector<8x256xf32>, i32 -> vector<8x256xf32>
    %c9 = arith.constant 9 : index
    %c0_16 = arith.constant 0 : index
    %80 = vector.load %arg4[%c9, %c0_16] : memref<25x256xf32, #tpu.memory_space<vmem>>, vector<1x256xf32>
    %81 = vector.broadcast %80 : vector<1x256xf32> to vector<8x256xf32>
    %82 = arith.mulf %79, %81 : vector<8x256xf32>
    %83 = vector.extract_strided_slice %3 {offsets = [0, 9], sizes = [8, 1], strides = [1, 1]} : vector<8x25xf32> to vector<8x1xf32>
    %84 = vector.broadcast %83 : vector<8x1xf32> to vector<8x256xf32>
    %85 = arith.mulf %84, %82 : vector<8x256xf32>
    %86 = arith.addf %78, %85 : vector<8x256xf32>
    %c2_i32 = arith.constant 2 : i32
    %87 = tpu.dynamic_rotate %1 by %c2_i32 dim 1 : vector<8x256xf32>, i32 -> vector<8x256xf32>
    %c10 = arith.constant 10 : index
    %c0_17 = arith.constant 0 : index
    %88 = vector.load %arg4[%c10, %c0_17] : memref<25x256xf32, #tpu.memory_space<vmem>>, vector<1x256xf32>
    %89 = vector.broadcast %88 : vector<1x256xf32> to vector<8x256xf32>
    %90 = arith.mulf %87, %89 : vector<8x256xf32>
    %91 = vector.extract_strided_slice %3 {offsets = [0, 10], sizes = [8, 1], strides = [1, 1]} : vector<8x25xf32> to vector<8x1xf32>
    %92 = vector.broadcast %91 : vector<8x1xf32> to vector<8x256xf32>
    %93 = arith.mulf %92, %90 : vector<8x256xf32>
    %94 = arith.addf %86, %93 : vector<8x256xf32>
    %c1_i32 = arith.constant 1 : i32
    %95 = tpu.dynamic_rotate %1 by %c1_i32 dim 1 : vector<8x256xf32>, i32 -> vector<8x256xf32>
    %c11 = arith.constant 11 : index
    %c0_18 = arith.constant 0 : index
    %96 = vector.load %arg4[%c11, %c0_18] : memref<25x256xf32, #tpu.memory_space<vmem>>, vector<1x256xf32>
    %97 = vector.broadcast %96 : vector<1x256xf32> to vector<8x256xf32>
    %98 = arith.mulf %95, %97 : vector<8x256xf32>
    %99 = vector.extract_strided_slice %3 {offsets = [0, 11], sizes = [8, 1], strides = [1, 1]} : vector<8x25xf32> to vector<8x1xf32>
    %100 = vector.broadcast %99 : vector<8x1xf32> to vector<8x256xf32>
    %101 = arith.mulf %100, %98 : vector<8x256xf32>
    %102 = arith.addf %94, %101 : vector<8x256xf32>
    %c12 = arith.constant 12 : index
    %c0_19 = arith.constant 0 : index
    %103 = vector.load %arg4[%c12, %c0_19] : memref<25x256xf32, #tpu.memory_space<vmem>>, vector<1x256xf32>
    %104 = vector.broadcast %103 : vector<1x256xf32> to vector<8x256xf32>
    %105 = arith.mulf %1, %104 : vector<8x256xf32>
    %106 = vector.extract_strided_slice %3 {offsets = [0, 12], sizes = [8, 1], strides = [1, 1]} : vector<8x25xf32> to vector<8x1xf32>
    %107 = vector.broadcast %106 : vector<8x1xf32> to vector<8x256xf32>
    %108 = arith.mulf %107, %105 : vector<8x256xf32>
    %109 = arith.addf %102, %108 : vector<8x256xf32>
    %c255_i32 = arith.constant 255 : i32
    %110 = tpu.dynamic_rotate %1 by %c255_i32 dim 1 : vector<8x256xf32>, i32 -> vector<8x256xf32>
    %c13 = arith.constant 13 : index
    %c0_20 = arith.constant 0 : index
    %111 = vector.load %arg4[%c13, %c0_20] : memref<25x256xf32, #tpu.memory_space<vmem>>, vector<1x256xf32>
    %112 = vector.broadcast %111 : vector<1x256xf32> to vector<8x256xf32>
    %113 = arith.mulf %110, %112 : vector<8x256xf32>
    %114 = vector.extract_strided_slice %3 {offsets = [0, 13], sizes = [8, 1], strides = [1, 1]} : vector<8x25xf32> to vector<8x1xf32>
    %115 = vector.broadcast %114 : vector<8x1xf32> to vector<8x256xf32>
    %116 = arith.mulf %115, %113 : vector<8x256xf32>
    %117 = arith.addf %109, %116 : vector<8x256xf32>
    %c254_i32 = arith.constant 254 : i32
    %118 = tpu.dynamic_rotate %1 by %c254_i32 dim 1 : vector<8x256xf32>, i32 -> vector<8x256xf32>
    %c14 = arith.constant 14 : index
    %c0_21 = arith.constant 0 : index
    %119 = vector.load %arg4[%c14, %c0_21] : memref<25x256xf32, #tpu.memory_space<vmem>>, vector<1x256xf32>
    %120 = vector.broadcast %119 : vector<1x256xf32> to vector<8x256xf32>
    %121 = arith.mulf %118, %120 : vector<8x256xf32>
    %122 = vector.extract_strided_slice %3 {offsets = [0, 14], sizes = [8, 1], strides = [1, 1]} : vector<8x25xf32> to vector<8x1xf32>
    %123 = vector.broadcast %122 : vector<8x1xf32> to vector<8x256xf32>
    %124 = arith.mulf %123, %121 : vector<8x256xf32>
    %125 = arith.addf %117, %124 : vector<8x256xf32>
    %c242_i32 = arith.constant 242 : i32
    %126 = tpu.dynamic_rotate %1 by %c242_i32 dim 1 : vector<8x256xf32>, i32 -> vector<8x256xf32>
    %c15 = arith.constant 15 : index
    %c0_22 = arith.constant 0 : index
    %127 = vector.load %arg4[%c15, %c0_22] : memref<25x256xf32, #tpu.memory_space<vmem>>, vector<1x256xf32>
    %128 = vector.broadcast %127 : vector<1x256xf32> to vector<8x256xf32>
    %129 = arith.mulf %126, %128 : vector<8x256xf32>
    %130 = vector.extract_strided_slice %3 {offsets = [0, 15], sizes = [8, 1], strides = [1, 1]} : vector<8x25xf32> to vector<8x1xf32>
    %131 = vector.broadcast %130 : vector<8x1xf32> to vector<8x256xf32>
    %132 = arith.mulf %131, %129 : vector<8x256xf32>
    %133 = arith.addf %125, %132 : vector<8x256xf32>
    %c241_i32 = arith.constant 241 : i32
    %134 = tpu.dynamic_rotate %1 by %c241_i32 dim 1 : vector<8x256xf32>, i32 -> vector<8x256xf32>
    %c16 = arith.constant 16 : index
    %c0_23 = arith.constant 0 : index
    %135 = vector.load %arg4[%c16, %c0_23] : memref<25x256xf32, #tpu.memory_space<vmem>>, vector<1x256xf32>
    %136 = vector.broadcast %135 : vector<1x256xf32> to vector<8x256xf32>
    %137 = arith.mulf %134, %136 : vector<8x256xf32>
    %138 = vector.extract_strided_slice %3 {offsets = [0, 16], sizes = [8, 1], strides = [1, 1]} : vector<8x25xf32> to vector<8x1xf32>
    %139 = vector.broadcast %138 : vector<8x1xf32> to vector<8x256xf32>
    %140 = arith.mulf %139, %137 : vector<8x256xf32>
    %141 = arith.addf %133, %140 : vector<8x256xf32>
    %c240_i32 = arith.constant 240 : i32
    %142 = tpu.dynamic_rotate %1 by %c240_i32 dim 1 : vector<8x256xf32>, i32 -> vector<8x256xf32>
    %c17 = arith.constant 17 : index
    %c0_24 = arith.constant 0 : index
    %143 = vector.load %arg4[%c17, %c0_24] : memref<25x256xf32, #tpu.memory_space<vmem>>, vector<1x256xf32>
    %144 = vector.broadcast %143 : vector<1x256xf32> to vector<8x256xf32>
    %145 = arith.mulf %142, %144 : vector<8x256xf32>
    %146 = vector.extract_strided_slice %3 {offsets = [0, 17], sizes = [8, 1], strides = [1, 1]} : vector<8x25xf32> to vector<8x1xf32>
    %147 = vector.broadcast %146 : vector<8x1xf32> to vector<8x256xf32>
    %148 = arith.mulf %147, %145 : vector<8x256xf32>
    %149 = arith.addf %141, %148 : vector<8x256xf32>
    %c239_i32 = arith.constant 239 : i32
    %150 = tpu.dynamic_rotate %1 by %c239_i32 dim 1 : vector<8x256xf32>, i32 -> vector<8x256xf32>
    %c18 = arith.constant 18 : index
    %c0_25 = arith.constant 0 : index
    %151 = vector.load %arg4[%c18, %c0_25] : memref<25x256xf32, #tpu.memory_space<vmem>>, vector<1x256xf32>
    %152 = vector.broadcast %151 : vector<1x256xf32> to vector<8x256xf32>
    %153 = arith.mulf %150, %152 : vector<8x256xf32>
    %154 = vector.extract_strided_slice %3 {offsets = [0, 18], sizes = [8, 1], strides = [1, 1]} : vector<8x25xf32> to vector<8x1xf32>
    %155 = vector.broadcast %154 : vector<8x1xf32> to vector<8x256xf32>
    %156 = arith.mulf %155, %153 : vector<8x256xf32>
    %157 = arith.addf %149, %156 : vector<8x256xf32>
    %c238_i32 = arith.constant 238 : i32
    %158 = tpu.dynamic_rotate %1 by %c238_i32 dim 1 : vector<8x256xf32>, i32 -> vector<8x256xf32>
    %c19 = arith.constant 19 : index
    %c0_26 = arith.constant 0 : index
    %159 = vector.load %arg4[%c19, %c0_26] : memref<25x256xf32, #tpu.memory_space<vmem>>, vector<1x256xf32>
    %160 = vector.broadcast %159 : vector<1x256xf32> to vector<8x256xf32>
    %161 = arith.mulf %158, %160 : vector<8x256xf32>
    %162 = vector.extract_strided_slice %3 {offsets = [0, 19], sizes = [8, 1], strides = [1, 1]} : vector<8x25xf32> to vector<8x1xf32>
    %163 = vector.broadcast %162 : vector<8x1xf32> to vector<8x256xf32>
    %164 = arith.mulf %163, %161 : vector<8x256xf32>
    %165 = arith.addf %157, %164 : vector<8x256xf32>
    %c226_i32 = arith.constant 226 : i32
    %166 = tpu.dynamic_rotate %1 by %c226_i32 dim 1 : vector<8x256xf32>, i32 -> vector<8x256xf32>
    %c20 = arith.constant 20 : index
    %c0_27 = arith.constant 0 : index
    %167 = vector.load %arg4[%c20, %c0_27] : memref<25x256xf32, #tpu.memory_space<vmem>>, vector<1x256xf32>
    %168 = vector.broadcast %167 : vector<1x256xf32> to vector<8x256xf32>
    %169 = arith.mulf %166, %168 : vector<8x256xf32>
    %170 = vector.extract_strided_slice %3 {offsets = [0, 20], sizes = [8, 1], strides = [1, 1]} : vector<8x25xf32> to vector<8x1xf32>
    %171 = vector.broadcast %170 : vector<8x1xf32> to vector<8x256xf32>
    %172 = arith.mulf %171, %169 : vector<8x256xf32>
    %173 = arith.addf %165, %172 : vector<8x256xf32>
    %c225_i32 = arith.constant 225 : i32
    %174 = tpu.dynamic_rotate %1 by %c225_i32 dim 1 : vector<8x256xf32>, i32 -> vector<8x256xf32>
    %c21 = arith.constant 21 : index
    %c0_28 = arith.constant 0 : index
    %175 = vector.load %arg4[%c21, %c0_28] : memref<25x256xf32, #tpu.memory_space<vmem>>, vector<1x256xf32>
    %176 = vector.broadcast %175 : vector<1x256xf32> to vector<8x256xf32>
    %177 = arith.mulf %174, %176 : vector<8x256xf32>
    %178 = vector.extract_strided_slice %3 {offsets = [0, 21], sizes = [8, 1], strides = [1, 1]} : vector<8x25xf32> to vector<8x1xf32>
    %179 = vector.broadcast %178 : vector<8x1xf32> to vector<8x256xf32>
    %180 = arith.mulf %179, %177 : vector<8x256xf32>
    %181 = arith.addf %173, %180 : vector<8x256xf32>
    %c224_i32 = arith.constant 224 : i32
    %182 = tpu.dynamic_rotate %1 by %c224_i32 dim 1 : vector<8x256xf32>, i32 -> vector<8x256xf32>
    %c22 = arith.constant 22 : index
    %c0_29 = arith.constant 0 : index
    %183 = vector.load %arg4[%c22, %c0_29] : memref<25x256xf32, #tpu.memory_space<vmem>>, vector<1x256xf32>
    %184 = vector.broadcast %183 : vector<1x256xf32> to vector<8x256xf32>
    %185 = arith.mulf %182, %184 : vector<8x256xf32>
    %186 = vector.extract_strided_slice %3 {offsets = [0, 22], sizes = [8, 1], strides = [1, 1]} : vector<8x25xf32> to vector<8x1xf32>
    %187 = vector.broadcast %186 : vector<8x1xf32> to vector<8x256xf32>
    %188 = arith.mulf %187, %185 : vector<8x256xf32>
    %189 = arith.addf %181, %188 : vector<8x256xf32>
    %c223_i32 = arith.constant 223 : i32
    %190 = tpu.dynamic_rotate %1 by %c223_i32 dim 1 : vector<8x256xf32>, i32 -> vector<8x256xf32>
    %c23 = arith.constant 23 : index
    %c0_30 = arith.constant 0 : index
    %191 = vector.load %arg4[%c23, %c0_30] : memref<25x256xf32, #tpu.memory_space<vmem>>, vector<1x256xf32>
    %192 = vector.broadcast %191 : vector<1x256xf32> to vector<8x256xf32>
    %193 = arith.mulf %190, %192 : vector<8x256xf32>
    %194 = vector.extract_strided_slice %3 {offsets = [0, 23], sizes = [8, 1], strides = [1, 1]} : vector<8x25xf32> to vector<8x1xf32>
    %195 = vector.broadcast %194 : vector<8x1xf32> to vector<8x256xf32>
    %196 = arith.mulf %195, %193 : vector<8x256xf32>
    %197 = arith.addf %189, %196 : vector<8x256xf32>
    %c222_i32 = arith.constant 222 : i32
    %198 = tpu.dynamic_rotate %1 by %c222_i32 dim 1 : vector<8x256xf32>, i32 -> vector<8x256xf32>
    %c24 = arith.constant 24 : index
    %c0_31 = arith.constant 0 : index
    %199 = vector.load %arg4[%c24, %c0_31] : memref<25x256xf32, #tpu.memory_space<vmem>>, vector<1x256xf32>
    %200 = vector.broadcast %199 : vector<1x256xf32> to vector<8x256xf32>
    %201 = arith.mulf %198, %200 : vector<8x256xf32>
    %202 = vector.extract_strided_slice %3 {offsets = [0, 24], sizes = [8, 1], strides = [1, 1]} : vector<8x25xf32> to vector<8x1xf32>
    %203 = vector.broadcast %202 : vector<8x1xf32> to vector<8x256xf32>
    %204 = arith.mulf %203, %201 : vector<8x256xf32>
    %205 = arith.addf %197, %204 : vector<8x256xf32>
    %c0_32 = arith.constant 0 : index
    %c0_33 = arith.constant 0 : index
    %c0_34 = arith.constant 0 : index
    %206 = vector.load %arg6[%c0_32, %c0_33, %c0_34] : memref<1x8x256xf32, #tpu.memory_space<vmem>>, vector<1x8x256xf32>
    %207 = vector.shape_cast %206 : vector<1x8x256xf32> to vector<8x256xf32>
    %208 = vector.shape_cast %205 : vector<8x256xf32> to vector<1x8x256xf32>
    tpu.vector_store %arg6[%c0_32, %c0_33, %c0_34], %208 {strides = array<i32>} : memref<1x8x256xf32, #tpu.memory_space<vmem>>, vector<1x8x256xf32>,
    return
  }
  func.func @transform_0(%arg0: i32, %arg1: i32) -> (i32, i32) {
    %c0_i32 = arith.constant 0 : i32
    %c0_i32_0 = arith.constant 0 : i32
    return %arg1, %c0_i32 : i32, i32
  }
  func.func @transform_1(%arg0: i32, %arg1: i32) -> (i32, i32) {
    %c0_i32 = arith.constant 0 : i32
    %c0_i32_0 = arith.constant 0 : i32
    return %arg1, %c0_i32 : i32, i32
  }
  func.func @transform_2(%arg0: i32, %arg1: i32) -> (i32, i32) {
    %c0_i32 = arith.constant 0 : i32
    %c0_i32_0 = arith.constant 0 : i32
    %c0_i32_1 = arith.constant 0 : i32
    return %c0_i32, %c0_i32_0 : i32, i32
  }
  func.func @transform_3(%arg0: i32, %arg1: i32) -> (i32, i32, i32) {
    %c0_i32 = arith.constant 0 : i32
    %c0_i32_0 = arith.constant 0 : i32
    return %arg0, %arg1, %c0_i32 : i32, i32, i32
  }
  func.func @transform_4(%arg0: i32, %arg1: i32) -> (i32, i32, i32) {
    %c0_i32 = arith.constant 0 : i32
    %c0_i32_0 = arith.constant 0 : i32
    return %arg0, %arg1, %c0_i32 : i32, i32, i32
  }
}

</mosaic_0001>

<llo_original>
// kernel: tpu_custom_call.1
$region0: #{tpu_custom_call.1}
  #allocation0 [shape = 'u32[]', space=smem, size = 0x4, offset = 0x4, fixed_abs, tag = 'smem constant byte address 0x4 - core index']
  #allocation1 [shape = 'u32[144,128]{1,0:T(1,128)}', space=vmem, size = 0x12000, scoped, tag = 'internal scratch']
  %s0 = inlined_call_operand.vmem [shape: f32[8,25], index: 0, kind: input, shape index: {}]
  %s1 = inlined_call_operand.vmem [shape: f32[8,1], index: 1, kind: input, shape index: {}]
  %s2 = inlined_call_operand.hbm [shape: f32[25,256], index: 2, kind: input, shape index: {}]
  %s3 = inlined_call_operand.hbm [shape: f32[2,8,256], index: 3, kind: input, shape index: {}]
  %s4 = inlined_call_operand.hbm [shape: f32[2,8,256], index: 4, kind: output, shape index: {}]
  %s5 = sld [smem:[#allocation0]]
  $region57: #{tpu_custom_call.1} parent=0
    _
  %s7 = ssub.s32 1, %s5
  %s8 = scalar_select 0, %s7, %s5
  $region1: #{tpu_custom_call.1} parent=0
    #allocation2 [shape = 'u8[32768]{0}', space=vmem, size = 0x8000, scoped, tag = 'input window, operand 2, single buffered']
    #allocation3 [shape = 's32[2]{0}', space=sflag, size = 0x8, scoped, tag = 'scoped memory for tpu_custom_call.1']
    #allocation4 [shape = 's32[2]{0}', space=sflag, size = 0x8, scoped, tag = 'scoped memory for tpu_custom_call.1']
    #allocation5 [shape = 'u8[16384]{0}', space=vmem, size = 0x4000, scoped, tag = 'input window, operand 3']
    #allocation6 [shape = 's32[2]{0}', space=sflag, size = 0x8, scoped, tag = 'scoped memory for tpu_custom_call.1']
    #allocation7 [shape = 'u8[16384]{0}', space=vmem, size = 0x4000, scoped, tag = 'output window, operand 0']
    %9 = vsyncpa [#allocation3], 0
    %10 = vsyncpa [#allocation6], 0
    %s11 = scalar_lea.sflag [#allocation6], 1
    %12 = vsyncpa %s11, 0
    %13 = vsyncpa [#allocation4], 0
    %s14 = scalar_lea.sflag [#allocation4], 1
    %15 = vsyncpa %s14, 0
    loop: start=0, step=1, limit=4
    $region2: #{tpu_custom_call.1} parent=1 // loop_pre_header
      _
    $region3: #{tpu_custom_call.1} parent=1 // loop_header
      %s17 = sphi 0, %s21
      %p18 = scmp.ge.s32.totalorder %s17, 4
      %s24 = sphi 0, %s36
      %s25 = sphi 0, %s32
      %s26 = sphi 0, %s24
      %s27 = sphi 0, %s25
      %s28 = sphi 0, %s26
      %s29 = sphi 0, %s27
      %s39 = sphi 0, %s41
      %s42 = sphi 0, %s39
      %s43 = sphi 0, %s42
      %s59 = sphi 0, %s43
      %s65 = sphi 0, %s67
      %s68 = sphi 0, %s65
      %s69 = sphi 0, %s68
      %s85 = sphi 0, %s69
      %s89 = sphi 0, %s89
      %s91 = sphi 0, %s89
      %s92 = sphi 0, %s91
      %s106 = sphi 0, %s92
      %s114 = sphi 0, %s116
      %s117 = sphi 0, %s114
      %s118 = sphi 0, %s117
      %s134 = sphi 0, %s118
      %s142 = sphi 0, %s144
      %s145 = sphi 0, %s142
      %s146 = sphi 0, %s145
      %s162 = sphi 0, %s146
    $region4: #{tpu_custom_call.1} parent=1 // loop_header_branch
      %20 = sbr.rel (%p18) target = $region8
    $region5: #{tpu_custom_call.1} parent=1 // loop_body
      %s22 = ssub.s32 %s17, 1
      %s23 = ssub.s32 %s17, 2
      %s30 = sadd.s32 1, %s25
      %p31 = scmp.ge.s32.totalorder %s30, 1
      %s32 = scalar_select %p31, 0, %s30
      %s33 = sadd.s32 1, %s24
      %s34 = scalar_select %p31, %s33, %s24
      %p35 = scmp.ge.s32.totalorder %s34, 2
      %s36 = scalar_select %p35, 0, %s34
      %s37 = ssub.s32 %s25, %s32
      %p38 = scmp.eq.s32.totalorder %s37, 0
      %s40 = sadd.s32 %s39, 1
      %s41 = scalar_select %p38, %s39, %s40
      %p44 = pneg %p38
      %p45 = scmp.eq.s32.totalorder %s17, 1
      %p46 = por %p44, %p45
      %p47 = scmp.ne.s32.totalorder %s39, %s42
      %p48 = scmp.eq.s32.totalorder %s17, 0
      %p49 = por %p47, %p48
      %p50 = scmp.ne.s32.totalorder %s39, %s42
      %p51 = scmp.eq.s32.totalorder %s22, 1
      %p52 = por %p50, %p51
      %p53 = scmp.ne.s32.totalorder %s42, %s43
      %p54 = scmp.eq.s32.totalorder %s22, 0
      %p55 = por %p53, %p54
      %p56 = scmp.ne.s32.totalorder %s42, %s43
      %p57 = scmp.eq.s32.totalorder %s23, 1
      %p58 = por %p56, %p57
      %p60 = scmp.ne.s32.totalorder %s43, %s59
      %p61 = scmp.eq.s32.totalorder %s23, 0
      %p62 = por %p60, %p61
      %s63 = ssub.s32 %s25, %s32
      %p64 = scmp.eq.s32.totalorder %s63, 0
      %s66 = sadd.s32 %s65, 1
      %s67 = scalar_select %p64, %s65, %s66
      %p70 = pneg %p64
      %p71 = scmp.eq.s32.totalorder %s17, 1
      %p72 = por %p70, %p71
      %p73 = scmp.ne.s32.totalorder %s65, %s68
      %p74 = scmp.eq.s32.totalorder %s17, 0
      %p75 = por %p73, %p74
      %p76 = scmp.ne.s32.totalorder %s65, %s68
      %p77 = scmp.eq.s32.totalorder %s22, 1
      %p78 = por %p76, %p77
      %p79 = scmp.ne.s32.totalorder %s68, %s69
      %p80 = scmp.eq.s32.totalorder %s22, 0
      %p81 = por %p79, %p80
      %p82 = scmp.ne.s32.totalorder %s68, %s69
      %p83 = scmp.eq.s32.totalorder %s23, 1
      %p84 = por %p82, %p83
      %p86 = scmp.ne.s32.totalorder %s69, %s85
      %p87 = scmp.eq.s32.totalorder %s23, 0
      %p88 = por %p86, %p87
      %s90 = sadd.s32 %s89, 1
      %p93 = scmp.eq.s32.totalorder %s17, 1
      %p94 = scmp.ne.s32.totalorder %s89, %s91
      %p95 = scmp.eq.s32.totalorder %s17, 0
      %p96 = por %p94, %p95
      %p97 = scmp.ne.s32.totalorder %s89, %s91
      %p98 = scmp.eq.s32.totalorder %s22, 1
      %p99 = por %p97, %p98
      %p100 = scmp.ne.s32.totalorder %s91, %s92
      %p101 = scmp.eq.s32.totalorder %s22, 0
      %p102 = por %p100, %p101
      %p103 = scmp.ne.s32.totalorder %s91, %s92
      %p104 = scmp.eq.s32.totalorder %s23, 1
      %p105 = por %p103, %p104
      %p107 = scmp.ne.s32.totalorder %s92, %s106
      %p108 = scmp.eq.s32.totalorder %s23, 0
      %p109 = por %p107, %p108
      %s110 = ssub.s32 %s24, %s36
      %s111 = ssub.s32 %s25, %s32
      %s112 = sor.u32 %s110, %s111
      %p113 = scmp.eq.s32.totalorder %s112, 0
      %s115 = sadd.s32 %s114, 1
      %s116 = scalar_select %p113, %s114, %s115
      %p119 = pneg %p113
      %p120 = scmp.eq.s32.totalorder %s17, 1
      %p121 = por %p119, %p120
      %p122 = scmp.ne.s32.totalorder %s114, %s117
      %p123 = scmp.eq.s32.totalorder %s17, 0
      %p124 = por %p122, %p123
      %p125 = scmp.ne.s32.totalorder %s114, %s117
      %p126 = scmp.eq.s32.totalorder %s22, 1
      %p127 = por %p125, %p126
      %p128 = scmp.ne.s32.totalorder %s117, %s118
      %p129 = scmp.eq.s32.totalorder %s22, 0
      %p130 = por %p128, %p129
      %p131 = scmp.ne.s32.totalorder %s117, %s118
      %p132 = scmp.eq.s32.totalorder %s23, 1
      %p133 = por %p131, %p132
      %p135 = scmp.ne.s32.totalorder %s118, %s134
      %p136 = scmp.eq.s32.totalorder %s23, 0
      %p137 = por %p135, %p136
      %s138 = ssub.s32 %s24, %s36
      %s139 = ssub.s32 %s25, %s32
      %s140 = sor.u32 %s138, %s139
      %p141 = scmp.eq.s32.totalorder %s140, 0
      %s143 = sadd.s32 %s142, 1
      %s144 = scalar_select %p141, %s142, %s143
      %p147 = pneg %p141
      %p148 = scmp.eq.s32.totalorder %s17, 1
      %p149 = por %p147, %p148
      %p150 = scmp.ne.s32.totalorder %s142, %s145
      %p151 = scmp.eq.s32.totalorder %s17, 0
      %p152 = por %p150, %p151
      %p153 = scmp.ne.s32.totalorder %s142, %s145
      %p154 = scmp.eq.s32.totalorder %s22, 1
      %p155 = por %p153, %p154
      %p156 = scmp.ne.s32.totalorder %s145, %s146
      %p157 = scmp.eq.s32.totalorder %s22, 0
      %p158 = por %p156, %p157
      %p159 = scmp.ne.s32.totalorder %s145, %s146
      %p160 = scmp.eq.s32.totalorder %s23, 1
      %p161 = por %p159, %p160
      %p163 = scmp.ne.s32.totalorder %s146, %s162
      %p164 = scmp.eq.s32.totalorder %s23, 0
      %p165 = por %p163, %p164
      %p166 = scmp.le.s32.totalorder 1, %s17
      %p167 = scmp.lt.s32.totalorder %s17, 3
      %p168 = pnand %p166, %p167
      %p169 = pneg %p168
      // Predicated region
      $region9: #{tpu_custom_call.1} parent=5 // pred_check
        _
      $region10: #{tpu_custom_call.1} parent=5 // pred_check_branch
        %171 = sbr.rel (%p168) target = $region12
      $region11: #{tpu_custom_call.1} parent=5 // pred_region
        %s172 = ssub.s32 %s17, 1
        // Predicated region
        $region13: #{tpu_custom_call.1} parent=11 // pred_check
          %p173 = pneg %p55
        $region14: #{tpu_custom_call.1} parent=11 // pred_check_branch
          %175 = sbr.rel (%p173) target = $region16
        $region15: #{tpu_custom_call.1} parent=11 // pred_region
          %p176 = scmp.lt.s32.totalorder %s27, 0
          %s177 = scalar_select %p176, %s27, 0
          %s178 = smul.addr %s177, 8
          %s179 = scalar_lea.vmem %s0, %s178
        $region16: #{tpu_custom_call.1} parent=11 // pred_fallthru
          _
        // Predicated region
        $region17: #{tpu_custom_call.1} parent=11 // pred_check
          %p180 = pneg %p81
        $region18: #{tpu_custom_call.1} parent=11 // pred_check_branch
          %182 = sbr.rel (%p180) target = $region20
        $region19: #{tpu_custom_call.1} parent=11 // pred_region
          %p183 = scmp.lt.s32.totalorder %s27, 0
          %s184 = scalar_select %p183, %s27, 0
          %s185 = smul.addr %s184, 8
          %s186 = scalar_lea.vmem %s1, %s185
        $region20: #{tpu_custom_call.1} parent=11 // pred_fallthru
          _
        // Predicated region
        $region21: #{tpu_custom_call.1} parent=11 // pred_check
          %p187 = pneg %p102
        $region22: #{tpu_custom_call.1} parent=11 // pred_check_branch
          %189 = sbr.rel (%p187) target = $region24
        $region23: #{tpu_custom_call.1} parent=11 // pred_region
          %s191 = ssub.s32 1024, 1024
          %192 = vsyncadd [#allocation3], %s191
          %s193 = sshll.u32 [#allocation2], 4
          %s194 = int_to_ptr.vmem [resolvable:$true] %s193
          %199 = dma.hbm_to_vmem [thread:$0]  %s2, 1024, %s194, [#allocation3], 256, 256, 16
        $region24: #{tpu_custom_call.1} parent=11 // pred_fallthru
          _
      $region12: #{tpu_custom_call.1} parent=5 // pred_fallthru
        _
      %p200 = scmp.lt.s32.totalorder %s17, 2
      // Predicated region
      $region25: #{tpu_custom_call.1} parent=5 // pred_check
        %p201 = pneg %p200
      $region26: #{tpu_custom_call.1} parent=5 // pred_check_branch
        %203 = sbr.rel (%p201) target = $region28
      $region27: #{tpu_custom_call.1} parent=5 // pred_region
        // Predicated region
        $region29: #{tpu_custom_call.1} parent=27 // pred_check
          %p204 = pneg %p124
        $region30: #{tpu_custom_call.1} parent=27 // pred_check_branch
          %206 = sbr.rel (%p204) target = $region32
        $region31: #{tpu_custom_call.1} parent=27 // pred_region
          %s207 = sand.u32 %s114, 1
          %s208 = scalar_lea.sflag [#allocation6], %s207
          %s209 = sand.u32 %s114, 1
          %s210 = smul.addr %s209, 16
          %s211 = scalar_lea.vmem [#allocation5], %s210
          %s213 = ssub.s32 256, 256
          %214 = vsyncadd %s208, %s213
          %s215 = smul.addr %s25, 2
          %s216 = smul.addr %s24, 2
          %s217 = sadd.s32 %s215, %s216
          %s218 = smul.addr %s217, 128
          %s219 = scalar_lea.hbm %s3, %s218
          %s221 = sshll.u32 %s211, 4
          %s222 = int_to_ptr.vmem [resolvable:$true] %s221
          %224 = dma.hbm_to_vmem [thread:$0]  %s219, 256, %s222, %s208
        $region32: #{tpu_custom_call.1} parent=27 // pred_fallthru
          _
      $region28: #{tpu_custom_call.1} parent=5 // pred_fallthru
        _
      %p225 = scmp.le.s32.totalorder 1, %s17
      %p226 = scmp.lt.s32.totalorder %s17, 3
      %p227 = pnand %p225, %p226
      %p228 = pneg %p227
      // Predicated region
      $region33: #{tpu_custom_call.1} parent=5 // pred_check
        _
      $region34: #{tpu_custom_call.1} parent=5 // pred_check_branch
        %230 = sbr.rel (%p227) target = $region36
      $region35: #{tpu_custom_call.1} parent=5 // pred_region
        %s231 = ssub.s32 %s17, 1
        // Predicated region
        $region37: #{tpu_custom_call.1} parent=35 // pred_check
          %p232 = pneg %p102
        $region38: #{tpu_custom_call.1} parent=35 // pred_check_branch
          %234 = sbr.rel (%p232) target = $region40
        $region39: #{tpu_custom_call.1} parent=35 // pred_region
          %235 = dma.done [#allocation3], 1024
        $region40: #{tpu_custom_call.1} parent=35 // pred_fallthru
          _
        %s236 = sand.u32 %s117, 1
        %s237 = scalar_lea.sflag [#allocation6], %s236
        %s238 = sand.u32 %s117, 1
        %s239 = smul.addr %s238, 16
        %s240 = scalar_lea.vmem [#allocation5], %s239
        // Predicated region
        $region41: #{tpu_custom_call.1} parent=35 // pred_check
          %p241 = pneg %p130
        $region42: #{tpu_custom_call.1} parent=35 // pred_check_branch
          %243 = sbr.rel (%p241) target = $region44
        $region43: #{tpu_custom_call.1} parent=35 // pred_region
          %244 = dma.done %s237, 256
        $region44: #{tpu_custom_call.1} parent=35 // pred_fallthru
          _
        %p245 = scmp.lt.s32.totalorder %s27, 0
        %s246 = scalar_select %p245, %s27, 0
        %s247 = smul.addr %s246, 8
        %s248 = scalar_lea.vmem %s0, %s247
        %p249 = pneg %p55
        %p250 = pneg %p52
        %p251 = scmp.lt.s32.totalorder %s27, 0
        %s252 = scalar_select %p251, %s27, 0
        %s253 = smul.addr %s252, 8
        %s254 = scalar_lea.vmem %s1, %s253
        %p255 = pneg %p81
        %p256 = pneg %p78
        %p257 = pneg %p102
        %p258 = pneg %p99
        %s259 = sand.u32 %s117, 1
        %s260 = scalar_lea.sflag [#allocation6], %s259
        %s261 = sand.u32 %s117, 1
        %s262 = smul.addr %s261, 16
        %s263 = scalar_lea.vmem [#allocation5], %s262
        %p264 = pneg %p130
        %p265 = pneg %p127
        %p266 = pneg %p158
        %p267 = pneg %p155
        %s268 = sand.u32 %s145, 1
        %s269 = scalar_lea.sflag [#allocation4], %s268
        %s270 = sand.u32 %s145, 1
        %s271 = smul.addr %s270, 16
        %s272 = scalar_lea.vmem [#allocation7], %s271
        %p273 = scmp.lt.s32.totalorder %s27, 0
        %s274 = scalar_select %p273, %s27, 0
        %s275 = smul.addr %s274, 8
        %s276 = scalar_lea.vmem %s0, %s275
        %p277 = scmp.lt.s32.totalorder %s27, 0
        %s278 = scalar_select %p277, %s27, 0
        %s279 = smul.addr %s278, 8
        %s280 = scalar_lea.vmem %s1, %s279
        %v281 = vld [vmem:[%s240] sm:$0xff]
        %v282 = vld [vmem:[%s240 + $0x8] sm:$0xff]
        %v283 = vld [vmem:[%s276] sm:$0xff]
        %v284 = vand.u32 2147483647, %v283
        %v285 = vld [vmem:[%s280] sm:$0xff]
        %287 = vset.pattern.permute.xlu0 0
        %288 = vperm.xlu0 %287, %v285
        %v289 = vpop.permute.xlu0 %288
        %291 = vrot.lane.b32.xlu0 %v281, 34
        %v292 = vpop.permute.xlu0 %291
        %293 = vrot.lane.b32.xlu0 %v282, 34
        %v294 = vpop.permute.xlu0 %293
        %v295 = vlaneseq
        %v296 = vand.u32 %v295, 127
        %vm297 = vcmp.lt.s32.totalorder %v296, 34
        %v298 = vsel %vm297, %v292, %v294
        %v299 = vsel %vm297, %v294, %v292
        %v300 = vld [vmem:[#allocation2] ss:$8 sm:$0x3]
        %v302 = vlaneseq
        %v303 = vshrl.u32 %v302, 7
        %v304 = vsub.s32 0, %v303
        %v305 = vrot.slane %v300, %v304
        %v306 = vlaneseq
        %v307 = vshrl.u32 %v306, 7
        %v308 = vsub.s32 1, %v307
        %v309 = vrot.slane %v300, %v308
        %v312 = vmul.f32 %v299, %v305
        %v313 = vmul.f32 %v298, %v309
        %315 = vset.pattern.permute.xlu0 0
        %316 = vperm.xlu0 %315, %v284
        %v317 = vpop.permute.xlu0 %316
        %v319 = vmul.f32 %v317, %v312
        %v320 = vmul.f32 %v317, %v313
        %v321 = vadd.f32 %v289, %v319
        %v322 = vadd.f32 %v289, %v320
        %323 = vrot.lane.b32.xlu0 %v281, 33
        %v324 = vpop.permute.xlu0 %323
        %325 = vrot.lane.b32.xlu0 %v282, 33
        %v326 = vpop.permute.xlu0 %325
        %vm327 = vcmp.lt.s32.totalorder %v296, 33
        %v328 = vsel %vm327, %v324, %v326
        %v329 = vsel %vm327, %v326, %v324
        %s330 = scalar_lea.vmem [#allocation2], 1
        %v331 = vld [vmem:[%s330] ss:$8 sm:$0x3]
        %v333 = vlaneseq
        %v334 = vshrl.u32 %v333, 7
        %v335 = vsub.s32 0, %v334
        %v336 = vrot.slane %v331, %v335
        %v337 = vlaneseq
        %v338 = vshrl.u32 %v337, 7
        %v339 = vsub.s32 1, %v338
        %v340 = vrot.slane %v331, %v339
        %v343 = vmul.f32 %v329, %v336
        %v344 = vmul.f32 %v328, %v340
        %345 = vset.pattern.permute.xlu0 1
        %346 = vperm.xlu0 %345, %v284
        %v347 = vpop.permute.xlu0 %346
        %v349 = vmul.f32 %v347, %v343
        %v350 = vmul.f32 %v347, %v344
        %v351 = vadd.f32 %v321, %v349
        %v352 = vadd.f32 %v322, %v350
        %353 = vrot.lane.b32.xlu0 %v281, 32
        %v354 = vpop.permute.xlu0 %353
        %355 = vrot.lane.b32.xlu0 %v282, 32
        %v356 = vpop.permute.xlu0 %355
        %vm357 = vcmp.lt.s32.totalorder %v296, 32
        %v358 = vsel %vm357, %v354, %v356
        %v359 = vsel %vm357, %v356, %v354
        %s360 = scalar_lea.vmem [#allocation2], 2
        %v361 = vld [vmem:[%s360] ss:$8 sm:$0x3]
        %v363 = vlaneseq
        %v364 = vshrl.u32 %v363, 7
        %v365 = vsub.s32 0, %v364
        %v366 = vrot.slane %v361, %v365
        %v367 = vlaneseq
        %v368 = vshrl.u32 %v367, 7
        %v369 = vsub.s32 1, %v368
        %v370 = vrot.slane %v361, %v369
        %v373 = vmul.f32 %v359, %v366
        %v374 = vmul.f32 %v358, %v370
        %375 = vset.pattern.permute.xlu0 2
        %376 = vperm.xlu0 %375, %v284
        %v377 = vpop.permute.xlu0 %376
        %v379 = vmul.f32 %v377, %v373
        %v380 = vmul.f32 %v377, %v374
        %v381 = vadd.f32 %v351, %v379
        %v382 = vadd.f32 %v352, %v380
        %383 = vrot.lane.b32.xlu0 %v281, 31
        %v384 = vpop.permute.xlu0 %383
        %385 = vrot.lane.b32.xlu0 %v282, 31
        %v386 = vpop.permute.xlu0 %385
        %vm387 = vcmp.lt.s32.totalorder %v296, 31
        %v388 = vsel %vm387, %v384, %v386
        %v389 = vsel %vm387, %v386, %v384
        %s390 = scalar_lea.vmem [#allocation2], 3
        %v391 = vld [vmem:[%s390] ss:$8 sm:$0x3]
        %v393 = vlaneseq
        %v394 = vshrl.u32 %v393, 7
        %v395 = vsub.s32 0, %v394
        %v396 = vrot.slane %v391, %v395
        %v397 = vlaneseq
        %v398 = vshrl.u32 %v397, 7
        %v399 = vsub.s32 1, %v398
        %v400 = vrot.slane %v391, %v399
        %v403 = vmul.f32 %v389, %v396
        %v404 = vmul.f32 %v388, %v400
        %405 = vset.pattern.permute.xlu0 3
        %406 = vperm.xlu0 %405, %v284
        %v407 = vpop.permute.xlu0 %406
        %v409 = vmul.f32 %v407, %v403
        %v410 = vmul.f32 %v407, %v404
        %v411 = vadd.f32 %v381, %v409
        %v412 = vadd.f32 %v382, %v410
        %413 = vrot.lane.b32.xlu0 %v281, 30
        %v414 = vpop.permute.xlu0 %413
        %415 = vrot.lane.b32.xlu0 %v282, 30
        %v416 = vpop.permute.xlu0 %415
        %vm417 = vcmp.lt.s32.totalorder %v296, 30
        %v418 = vsel %vm417, %v414, %v416
        %v419 = vsel %vm417, %v416, %v414
        %s420 = scalar_lea.vmem [#allocation2], 4
        %v421 = vld [vmem:[%s420] ss:$8 sm:$0x3]
        %v423 = vlaneseq
        %v424 = vshrl.u32 %v423, 7
        %v425 = vsub.s32 0, %v424
        %v426 = vrot.slane %v421, %v425
        %v427 = vlaneseq
        %v428 = vshrl.u32 %v427, 7
        %v429 = vsub.s32 1, %v428
        %v430 = vrot.slane %v421, %v429
        %v433 = vmul.f32 %v419, %v426
        %v434 = vmul.f32 %v418, %v430
        %435 = vset.pattern.permute.xlu0 4
        %436 = vperm.xlu0 %435, %v284
        %v437 = vpop.permute.xlu0 %436
        %v439 = vmul.f32 %v437, %v433
        %v440 = vmul.f32 %v437, %v434
        %v441 = vadd.f32 %v411, %v439
        %v442 = vadd.f32 %v412, %v440
        %443 = vrot.lane.b32.xlu0 %v281, 18
        %v444 = vpop.permute.xlu0 %443
        %445 = vrot.lane.b32.xlu0 %v282, 18
        %v446 = vpop.permute.xlu0 %445
        %vm447 = vcmp.lt.s32.totalorder %v296, 18
        %v448 = vsel %vm447, %v444, %v446
        %v449 = vsel %vm447, %v446, %v444
        %s450 = scalar_lea.vmem [#allocation2], 5
        %v451 = vld [vmem:[%s450] ss:$8 sm:$0x3]
        %v453 = vlaneseq
        %v454 = vshrl.u32 %v453, 7
        %v455 = vsub.s32 0, %v454
        %v456 = vrot.slane %v451, %v455
        %v457 = vlaneseq
        %v458 = vshrl.u32 %v457, 7
        %v459 = vsub.s32 1, %v458
        %v460 = vrot.slane %v451, %v459
        %v463 = vmul.f32 %v449, %v456
        %v464 = vmul.f32 %v448, %v460
        %465 = vset.pattern.permute.xlu0 5
        %466 = vperm.xlu0 %465, %v284
        %v467 = vpop.permute.xlu0 %466
        %v469 = vmul.f32 %v467, %v463
        %v470 = vmul.f32 %v467, %v464
        %v471 = vadd.f32 %v441, %v469
        %v472 = vadd.f32 %v442, %v470
        %473 = vrot.lane.b32.xlu0 %v281, 17
        %v474 = vpop.permute.xlu0 %473
        %475 = vrot.lane.b32.xlu0 %v282, 17
        %v476 = vpop.permute.xlu0 %475
        %vm477 = vcmp.lt.s32.totalorder %v296, 17
        %v478 = vsel %vm477, %v474, %v476
        %v479 = vsel %vm477, %v476, %v474
        %s480 = scalar_lea.vmem [#allocation2], 6
        %v481 = vld [vmem:[%s480] ss:$8 sm:$0x3]
        %v483 = vlaneseq
        %v484 = vshrl.u32 %v483, 7
        %v485 = vsub.s32 0, %v484
        %v486 = vrot.slane %v481, %v485
        %v487 = vlaneseq
        %v488 = vshrl.u32 %v487, 7
        %v489 = vsub.s32 1, %v488
        %v490 = vrot.slane %v481, %v489
        %v493 = vmul.f32 %v479, %v486
        %v494 = vmul.f32 %v478, %v490
        %495 = vset.pattern.permute.xlu0 6
        %496 = vperm.xlu0 %495, %v284
        %v497 = vpop.permute.xlu0 %496
        %v499 = vmul.f32 %v497, %v493
        %v500 = vmul.f32 %v497, %v494
        %v501 = vadd.f32 %v471, %v499
        %v502 = vadd.f32 %v472, %v500
        %503 = vrot.lane.b32.xlu0 %v281, 16
        %v504 = vpop.permute.xlu0 %503
        %505 = vrot.lane.b32.xlu0 %v282, 16
        %v506 = vpop.permute.xlu0 %505
        %vm507 = vcmp.lt.s32.totalorder %v296, 16
        %v508 = vsel %vm507, %v504, %v506
        %v509 = vsel %vm507, %v506, %v504
        %s510 = scalar_lea.vmem [#allocation2], 7
        %v511 = vld [vmem:[%s510] ss:$8 sm:$0x3]
        %v513 = vlaneseq
        %v514 = vshrl.u32 %v513, 7
        %v515 = vsub.s32 0, %v514
        %v516 = vrot.slane %v511, %v515
        %v517 = vlaneseq
        %v518 = vshrl.u32 %v517, 7
        %v519 = vsub.s32 1, %v518
        %v520 = vrot.slane %v511, %v519
        %v523 = vmul.f32 %v509, %v516
        %v524 = vmul.f32 %v508, %v520
        %525 = vset.pattern.permute.xlu0 7
        %526 = vperm.xlu0 %525, %v284
        %v527 = vpop.permute.xlu0 %526
        %v529 = vmul.f32 %v527, %v523
        %v530 = vmul.f32 %v527, %v524
        %v531 = vadd.f32 %v501, %v529
        %v532 = vadd.f32 %v502, %v530
        %533 = vrot.lane.b32.xlu0 %v281, 15
        %v534 = vpop.permute.xlu0 %533
        %535 = vrot.lane.b32.xlu0 %v282, 15
        %v536 = vpop.permute.xlu0 %535
        %vm537 = vcmp.lt.s32.totalorder %v296, 15
        %v538 = vsel %vm537, %v534, %v536
        %v539 = vsel %vm537, %v536, %v534
        %s540 = scalar_lea.vmem [#allocation2], 16
        %v541 = vld [vmem:[%s540] ss:$8 sm:$0x3]
        %v543 = vlaneseq
        %v544 = vshrl.u32 %v543, 7
        %v545 = vsub.s32 0, %v544
        %v546 = vrot.slane %v541, %v545
        %v547 = vlaneseq
        %v548 = vshrl.u32 %v547, 7
        %v549 = vsub.s32 1, %v548
        %v550 = vrot.slane %v541, %v549
        %v553 = vmul.f32 %v539, %v546
        %v554 = vmul.f32 %v538, %v550
        %555 = vset.pattern.permute.xlu0 8
        %556 = vperm.xlu0 %555, %v284
        %v557 = vpop.permute.xlu0 %556
        %v559 = vmul.f32 %v557, %v553
        %v560 = vmul.f32 %v557, %v554
        %v561 = vadd.f32 %v531, %v559
        %v562 = vadd.f32 %v532, %v560
        %563 = vrot.lane.b32.xlu0 %v281, 14
        %v564 = vpop.permute.xlu0 %563
        %565 = vrot.lane.b32.xlu0 %v282, 14
        %v566 = vpop.permute.xlu0 %565
        %vm567 = vcmp.lt.s32.totalorder %v296, 14
        %v568 = vsel %vm567, %v564, %v566
        %v569 = vsel %vm567, %v566, %v564
        %s570 = scalar_lea.vmem [#allocation2], 17
        %v571 = vld [vmem:[%s570] ss:$8 sm:$0x3]
        %v573 = vlaneseq
        %v574 = vshrl.u32 %v573, 7
        %v575 = vsub.s32 0, %v574
        %v576 = vrot.slane %v571, %v575
        %v577 = vlaneseq
        %v578 = vshrl.u32 %v577, 7
        %v579 = vsub.s32 1, %v578
        %v580 = vrot.slane %v571, %v579
        %v583 = vmul.f32 %v569, %v576
        %v584 = vmul.f32 %v568, %v580
        %585 = vset.pattern.permute.xlu0 9
        %586 = vperm.xlu0 %585, %v284
        %v587 = vpop.permute.xlu0 %586
        %v589 = vmul.f32 %v587, %v583
        %v590 = vmul.f32 %v587, %v584
        %v591 = vadd.f32 %v561, %v589
        %v592 = vadd.f32 %v562, %v590
        %593 = vrot.lane.b32.xlu0 %v281, 2
        %v594 = vpop.permute.xlu0 %593
        %595 = vrot.lane.b32.xlu0 %v282, 2
        %v596 = vpop.permute.xlu0 %595
        %vm597 = vcmp.lt.s32.totalorder %v296, 2
        %v598 = vsel %vm597, %v594, %v596
        %v599 = vsel %vm597, %v596, %v594
        %s600 = scalar_lea.vmem [#allocation2], 18
        %v601 = vld [vmem:[%s600] ss:$8 sm:$0x3]
        %v603 = vlaneseq
        %v604 = vshrl.u32 %v603, 7
        %v605 = vsub.s32 0, %v604
        %v606 = vrot.slane %v601, %v605
        %v607 = vlaneseq
        %v608 = vshrl.u32 %v607, 7
        %v609 = vsub.s32 1, %v608
        %v610 = vrot.slane %v601, %v609
        %v613 = vmul.f32 %v599, %v606
        %v614 = vmul.f32 %v598, %v610
        %615 = vset.pattern.permute.xlu0 10
        %616 = vperm.xlu0 %615, %v284
        %v617 = vpop.permute.xlu0 %616
        %v619 = vmul.f32 %v617, %v613
        %v620 = vmul.f32 %v617, %v614
        %v621 = vadd.f32 %v591, %v619
        %v622 = vadd.f32 %v592, %v620
        %623 = vrot.lane.b32.xlu0 %v281, 1
        %v624 = vpop.permute.xlu0 %623
        %625 = vrot.lane.b32.xlu0 %v282, 1
        %v626 = vpop.permute.xlu0 %625
        %vm627 = vcmp.lt.s32.totalorder %v296, 1
        %v628 = vsel %vm627, %v624, %v626
        %v629 = vsel %vm627, %v626, %v624
        %s630 = scalar_lea.vmem [#allocation2], 19
        %v631 = vld [vmem:[%s630] ss:$8 sm:$0x3]
        %v633 = vlaneseq
        %v634 = vshrl.u32 %v633, 7
        %v635 = vsub.s32 0, %v634
        %v636 = vrot.slane %v631, %v635
        %v637 = vlaneseq
        %v638 = vshrl.u32 %v637, 7
        %v639 = vsub.s32 1, %v638
        %v640 = vrot.slane %v631, %v639
        %v643 = vmul.f32 %v629, %v636
        %v644 = vmul.f32 %v628, %v640
        %645 = vset.pattern.permute.xlu0 11
        %646 = vperm.xlu0 %645, %v284
        %v647 = vpop.permute.xlu0 %646
        %v649 = vmul.f32 %v647, %v643
        %v650 = vmul.f32 %v647, %v644
        %v651 = vadd.f32 %v621, %v649
        %v652 = vadd.f32 %v622, %v650
        %s653 = scalar_lea.vmem [#allocation2], 20
        %v654 = vld [vmem:[%s653] ss:$8 sm:$0x3]
        %v656 = vlaneseq
        %v657 = vshrl.u32 %v656, 7
        %v658 = vsub.s32 0, %v657
        %v659 = vrot.slane %v654, %v658
        %v660 = vlaneseq
        %v661 = vshrl.u32 %v660, 7
        %v662 = vsub.s32 1, %v661
        %v663 = vrot.slane %v654, %v662
        %v666 = vmul.f32 %v281, %v659
        %v667 = vmul.f32 %v282, %v663
        %668 = vset.pattern.permute.xlu0 12
        %669 = vperm.xlu0 %668, %v284
        %v670 = vpop.permute.xlu0 %669
        %v672 = vmul.f32 %v670, %v666
        %v673 = vmul.f32 %v670, %v667
        %v674 = vadd.f32 %v651, %v672
        %v675 = vadd.f32 %v652, %v673
        %676 = vrot.lane.b32.xlu0 %v281, 127
        %v677 = vpop.permute.xlu0 %676
        %678 = vrot.lane.b32.xlu0 %v282, 127
        %v679 = vpop.permute.xlu0 %678
        %vm680 = vcmp.lt.s32.totalorder %v296, 127
        %v681 = vsel %vm680, %v677, %v679
        %v682 = vsel %vm680, %v679, %v677
        %s683 = scalar_lea.vmem [#allocation2], 21
        %v684 = vld [vmem:[%s683] ss:$8 sm:$0x3]
        %v686 = vlaneseq
        %v687 = vshrl.u32 %v686, 7
        %v688 = vsub.s32 0, %v687
        %v689 = vrot.slane %v684, %v688
        %v690 = vlaneseq
        %v691 = vshrl.u32 %v690, 7
        %v692 = vsub.s32 1, %v691
        %v693 = vrot.slane %v684, %v692
        %v696 = vmul.f32 %v681, %v689
        %v697 = vmul.f32 %v682, %v693
        %698 = vset.pattern.permute.xlu0 13
        %699 = vperm.xlu0 %698, %v284
        %v700 = vpop.permute.xlu0 %699
        %v702 = vmul.f32 %v700, %v696
        %v703 = vmul.f32 %v700, %v697
        %v704 = vadd.f32 %v674, %v702
        %v705 = vadd.f32 %v675, %v703
        %706 = vrot.lane.b32.xlu0 %v281, 126
        %v707 = vpop.permute.xlu0 %706
        %708 = vrot.lane.b32.xlu0 %v282, 126
        %v709 = vpop.permute.xlu0 %708
        %vm710 = vcmp.lt.s32.totalorder %v296, 126
        %v711 = vsel %vm710, %v707, %v709
        %v712 = vsel %vm710, %v709, %v707
        %s713 = scalar_lea.vmem [#allocation2], 22
        %v714 = vld [vmem:[%s713] ss:$8 sm:$0x3]
        %v716 = vlaneseq
        %v717 = vshrl.u32 %v716, 7
        %v718 = vsub.s32 0, %v717
        %v719 = vrot.slane %v714, %v718
        %v720 = vlaneseq
        %v721 = vshrl.u32 %v720, 7
        %v722 = vsub.s32 1, %v721
        %v723 = vrot.slane %v714, %v722
        %v726 = vmul.f32 %v711, %v719
        %v727 = vmul.f32 %v712, %v723
        %728 = vset.pattern.permute.xlu0 14
        %729 = vperm.xlu0 %728, %v284
        %v730 = vpop.permute.xlu0 %729
        %v732 = vmul.f32 %v730, %v726
        %v733 = vmul.f32 %v730, %v727
        %v734 = vadd.f32 %v704, %v732
        %v735 = vadd.f32 %v705, %v733
        %736 = vrot.lane.b32.xlu0 %v281, 114
        %v737 = vpop.permute.xlu0 %736
        %738 = vrot.lane.b32.xlu0 %v282, 114
        %v739 = vpop.permute.xlu0 %738
        %vm740 = vcmp.lt.s32.totalorder %v296, 114
        %v741 = vsel %vm740, %v737, %v739
        %v742 = vsel %vm740, %v739, %v737
        %s743 = scalar_lea.vmem [#allocation2], 23
        %v744 = vld [vmem:[%s743] ss:$8 sm:$0x3]
        %v746 = vlaneseq
        %v747 = vshrl.u32 %v746, 7
        %v748 = vsub.s32 0, %v747
        %v749 = vrot.slane %v744, %v748
        %v750 = vlaneseq
        %v751 = vshrl.u32 %v750, 7
        %v752 = vsub.s32 1, %v751
        %v753 = vrot.slane %v744, %v752
        %v756 = vmul.f32 %v741, %v749
        %v757 = vmul.f32 %v742, %v753
        %758 = vset.pattern.permute.xlu0 15
        %759 = vperm.xlu0 %758, %v284
        %v760 = vpop.permute.xlu0 %759
        %v762 = vmul.f32 %v760, %v756
        %v763 = vmul.f32 %v760, %v757
        %v764 = vadd.f32 %v734, %v762
        %v765 = vadd.f32 %v735, %v763
        %766 = vrot.lane.b32.xlu0 %v281, 113
        %v767 = vpop.permute.xlu0 %766
        %768 = vrot.lane.b32.xlu0 %v282, 113
        %v769 = vpop.permute.xlu0 %768
        %vm770 = vcmp.lt.s32.totalorder %v296, 113
        %v771 = vsel %vm770, %v767, %v769
        %v772 = vsel %vm770, %v769, %v767
        %s773 = scalar_lea.vmem [#allocation2], 32
        %v774 = vld [vmem:[%s773] ss:$8 sm:$0x3]
        %v776 = vlaneseq
        %v777 = vshrl.u32 %v776, 7
        %v778 = vsub.s32 0, %v777
        %v779 = vrot.slane %v774, %v778
        %v780 = vlaneseq
        %v781 = vshrl.u32 %v780, 7
        %v782 = vsub.s32 1, %v781
        %v783 = vrot.slane %v774, %v782
        %v786 = vmul.f32 %v771, %v779
        %v787 = vmul.f32 %v772, %v783
        %788 = vset.pattern.permute.xlu0 16
        %789 = vperm.xlu0 %788, %v284
        %v790 = vpop.permute.xlu0 %789
        %v792 = vmul.f32 %v790, %v786
        %v793 = vmul.f32 %v790, %v787
        %v794 = vadd.f32 %v764, %v792
        %v795 = vadd.f32 %v765, %v793
        %796 = vrot.lane.b32.xlu0 %v281, 112
        %v797 = vpop.permute.xlu0 %796
        %798 = vrot.lane.b32.xlu0 %v282, 112
        %v799 = vpop.permute.xlu0 %798
        %vm800 = vcmp.lt.s32.totalorder %v296, 112
        %v801 = vsel %vm800, %v797, %v799
        %v802 = vsel %vm800, %v799, %v797
        %s803 = scalar_lea.vmem [#allocation2], 33
        %v804 = vld [vmem:[%s803] ss:$8 sm:$0x3]
        %v806 = vlaneseq
        %v807 = vshrl.u32 %v806, 7
        %v808 = vsub.s32 0, %v807
        %v809 = vrot.slane %v804, %v808
        %v810 = vlaneseq
        %v811 = vshrl.u32 %v810, 7
        %v812 = vsub.s32 1, %v811
        %v813 = vrot.slane %v804, %v812
        %v816 = vmul.f32 %v801, %v809
        %v817 = vmul.f32 %v802, %v813
        %818 = vset.pattern.permute.xlu0 17
        %819 = vperm.xlu0 %818, %v284
        %v820 = vpop.permute.xlu0 %819
        %v822 = vmul.f32 %v820, %v816
        %v823 = vmul.f32 %v820, %v817
        %v824 = vadd.f32 %v794, %v822
        %v825 = vadd.f32 %v795, %v823
        %826 = vrot.lane.b32.xlu0 %v281, 111
        %v827 = vpop.permute.xlu0 %826
        %828 = vrot.lane.b32.xlu0 %v282, 111
        %v829 = vpop.permute.xlu0 %828
        %vm830 = vcmp.lt.s32.totalorder %v296, 111
        %v831 = vsel %vm830, %v827, %v829
        %v832 = vsel %vm830, %v829, %v827
        %s833 = scalar_lea.vmem [#allocation2], 34
        %v834 = vld [vmem:[%s833] ss:$8 sm:$0x3]
        %v836 = vlaneseq
        %v837 = vshrl.u32 %v836, 7
        %v838 = vsub.s32 0, %v837
        %v839 = vrot.slane %v834, %v838
        %v840 = vlaneseq
        %v841 = vshrl.u32 %v840, 7
        %v842 = vsub.s32 1, %v841
        %v843 = vrot.slane %v834, %v842
        %v846 = vmul.f32 %v831, %v839
        %v847 = vmul.f32 %v832, %v843
        %848 = vset.pattern.permute.xlu0 18
        %849 = vperm.xlu0 %848, %v284
        %v850 = vpop.permute.xlu0 %849
        %v852 = vmul.f32 %v850, %v846
        %v853 = vmul.f32 %v850, %v847
        %v854 = vadd.f32 %v824, %v852
        %v855 = vadd.f32 %v825, %v853
        %856 = vrot.lane.b32.xlu0 %v281, 110
        %v857 = vpop.permute.xlu0 %856
        %858 = vrot.lane.b32.xlu0 %v282, 110
        %v859 = vpop.permute.xlu0 %858
        %vm860 = vcmp.lt.s32.totalorder %v296, 110
        %v861 = vsel %vm860, %v857, %v859
        %v862 = vsel %vm860, %v859, %v857
        %s863 = scalar_lea.vmem [#allocation2], 35
        %v864 = vld [vmem:[%s863] ss:$8 sm:$0x3]
        %v866 = vlaneseq
        %v867 = vshrl.u32 %v866, 7
        %v868 = vsub.s32 0, %v867
        %v869 = vrot.slane %v864, %v868
        %v870 = vlaneseq
        %v871 = vshrl.u32 %v870, 7
        %v872 = vsub.s32 1, %v871
        %v873 = vrot.slane %v864, %v872
        %v876 = vmul.f32 %v861, %v869
        %v877 = vmul.f32 %v862, %v873
        %878 = vset.pattern.permute.xlu0 19
        %879 = vperm.xlu0 %878, %v284
        %v880 = vpop.permute.xlu0 %879
        %v882 = vmul.f32 %v880, %v876
        %v883 = vmul.f32 %v880, %v877
        %v884 = vadd.f32 %v854, %v882
        %v885 = vadd.f32 %v855, %v883
        %886 = vrot.lane.b32.xlu0 %v281, 98
        %v887 = vpop.permute.xlu0 %886
        %888 = vrot.lane.b32.xlu0 %v282, 98
        %v889 = vpop.permute.xlu0 %888
        %vm890 = vcmp.lt.s32.totalorder %v296, 98
        %v891 = vsel %vm890, %v887, %v889
        %v892 = vsel %vm890, %v889, %v887
        %s893 = scalar_lea.vmem [#allocation2], 36
        %v894 = vld [vmem:[%s893] ss:$8 sm:$0x3]
        %v896 = vlaneseq
        %v897 = vshrl.u32 %v896, 7
        %v898 = vsub.s32 0, %v897
        %v899 = vrot.slane %v894, %v898
        %v900 = vlaneseq
        %v901 = vshrl.u32 %v900, 7
        %v902 = vsub.s32 1, %v901
        %v903 = vrot.slane %v894, %v902
        %v906 = vmul.f32 %v891, %v899
        %v907 = vmul.f32 %v892, %v903
        %908 = vset.pattern.permute.xlu0 20
        %909 = vperm.xlu0 %908, %v284
        %v910 = vpop.permute.xlu0 %909
        %v912 = vmul.f32 %v910, %v906
        %v913 = vmul.f32 %v910, %v907
        %v914 = vadd.f32 %v884, %v912
        %v915 = vadd.f32 %v885, %v913
        %916 = vrot.lane.b32.xlu0 %v281, 97
        %v917 = vpop.permute.xlu0 %916
        %918 = vrot.lane.b32.xlu0 %v282, 97
        %v919 = vpop.permute.xlu0 %918
        %vm920 = vcmp.lt.s32.totalorder %v296, 97
        %v921 = vsel %vm920, %v917, %v919
        %v922 = vsel %vm920, %v919, %v917
        %s923 = scalar_lea.vmem [#allocation2], 37
        %v924 = vld [vmem:[%s923] ss:$8 sm:$0x3]
        %v926 = vlaneseq
        %v927 = vshrl.u32 %v926, 7
        %v928 = vsub.s32 0, %v927
        %v929 = vrot.slane %v924, %v928
        %v930 = vlaneseq
        %v931 = vshrl.u32 %v930, 7
        %v932 = vsub.s32 1, %v931
        %v933 = vrot.slane %v924, %v932
        %v936 = vmul.f32 %v921, %v929
        %v937 = vmul.f32 %v922, %v933
        %938 = vset.pattern.permute.xlu0 21
        %939 = vperm.xlu0 %938, %v284
        %v940 = vpop.permute.xlu0 %939
        %v942 = vmul.f32 %v940, %v936
        %v943 = vmul.f32 %v940, %v937
        %v944 = vadd.f32 %v914, %v942
        %v945 = vadd.f32 %v915, %v943
        %946 = vrot.lane.b32.xlu0 %v281, 96
        %v947 = vpop.permute.xlu0 %946
        %948 = vrot.lane.b32.xlu0 %v282, 96
        %v949 = vpop.permute.xlu0 %948
        %vm950 = vcmp.lt.s32.totalorder %v296, 96
        %v951 = vsel %vm950, %v947, %v949
        %v952 = vsel %vm950, %v949, %v947
        %s953 = scalar_lea.vmem [#allocation2], 38
        %v954 = vld [vmem:[%s953] ss:$8 sm:$0x3]
        %v956 = vlaneseq
        %v957 = vshrl.u32 %v956, 7
        %v958 = vsub.s32 0, %v957
        %v959 = vrot.slane %v954, %v958
        %v960 = vlaneseq
        %v961 = vshrl.u32 %v960, 7
        %v962 = vsub.s32 1, %v961
        %v963 = vrot.slane %v954, %v962
        %v966 = vmul.f32 %v951, %v959
        %v967 = vmul.f32 %v952, %v963
        %968 = vset.pattern.permute.xlu0 22
        %969 = vperm.xlu0 %968, %v284
        %v970 = vpop.permute.xlu0 %969
        %v972 = vmul.f32 %v970, %v966
        %v973 = vmul.f32 %v970, %v967
        %v974 = vadd.f32 %v944, %v972
        %v975 = vadd.f32 %v945, %v973
        %976 = vrot.lane.b32.xlu0 %v281, 95
        %v977 = vpop.permute.xlu0 %976
        %978 = vrot.lane.b32.xlu0 %v282, 95
        %v979 = vpop.permute.xlu0 %978
        %vm980 = vcmp.lt.s32.totalorder %v296, 95
        %v981 = vsel %vm980, %v977, %v979
        %v982 = vsel %vm980, %v979, %v977
        %s983 = scalar_lea.vmem [#allocation2], 39
        %v984 = vld [vmem:[%s983] ss:$8 sm:$0x3]
        %v986 = vlaneseq
        %v987 = vshrl.u32 %v986, 7
        %v988 = vsub.s32 0, %v987
        %v989 = vrot.slane %v984, %v988
        %v990 = vlaneseq
        %v991 = vshrl.u32 %v990, 7
        %v992 = vsub.s32 1, %v991
        %v993 = vrot.slane %v984, %v992
        %v996 = vmul.f32 %v981, %v989
        %v997 = vmul.f32 %v982, %v993
        %998 = vset.pattern.permute.xlu0 23
        %999 = vperm.xlu0 %998, %v284
        %v1000 = vpop.permute.xlu0 %999
        %v1002 = vmul.f32 %v1000, %v996
        %v1003 = vmul.f32 %v1000, %v997
        %v1004 = vadd.f32 %v974, %v1002
        %v1005 = vadd.f32 %v975, %v1003
        %1006 = vrot.lane.b32.xlu0 %v281, 94
        %v1007 = vpop.permute.xlu0 %1006
        %1008 = vrot.lane.b32.xlu0 %v282, 94
        %v1009 = vpop.permute.xlu0 %1008
        %vm1010 = vcmp.lt.s32.totalorder %v296, 94
        %v1011 = vsel %vm1010, %v1007, %v1009
        %v1012 = vsel %vm1010, %v1009, %v1007
        %s1013 = scalar_lea.vmem [#allocation2], 48
        %v1014 = vld [vmem:[%s1013] ss:$8 sm:$0x3]
        %v1016 = vlaneseq
        %v1017 = vshrl.u32 %v1016, 7
        %v1018 = vsub.s32 0, %v1017
        %v1019 = vrot.slane %v1014, %v1018
        %v1020 = vlaneseq
        %v1021 = vshrl.u32 %v1020, 7
        %v1022 = vsub.s32 1, %v1021
        %v1023 = vrot.slane %v1014, %v1022
        %v1026 = vmul.f32 %v1011, %v1019
        %v1027 = vmul.f32 %v1012, %v1023
        %1028 = vset.pattern.permute.xlu0 24
        %1029 = vperm.xlu0 %1028, %v284
        %v1030 = vpop.permute.xlu0 %1029
        %v1032 = vmul.f32 %v1030, %v1026
        %v1033 = vmul.f32 %v1030, %v1027
        %v1034 = vadd.f32 %v1004, %v1032
        %v1035 = vadd.f32 %v1005, %v1033
        %1036 = vst [vmem:[%s272] sm:$0xff] %v1034
        %1037 = vst [vmem:[%s272 + $0x8] sm:$0xff] %v1035
        %s1038 = sand.u32 %s145, 1
        %s1039 = scalar_lea.sflag [#allocation4], %s1038
        %s1040 = sand.u32 %s145, 1
        %s1041 = smul.addr %s1040, 16
        %s1042 = scalar_lea.vmem [#allocation7], %s1041
        // Predicated region
        $region45: #{tpu_custom_call.1} parent=35 // pred_check
          %p1043 = pneg %p155
        $region46: #{tpu_custom_call.1} parent=35 // pred_check_branch
          %1045 = sbr.rel (%p1043) target = $region48
        $region47: #{tpu_custom_call.1} parent=35 // pred_region
          %s1047 = ssub.s32 256, 256
          %1048 = vsyncadd %s1039, %s1047
          %s1049 = smul.addr %s27, 2
          %s1050 = smul.addr %s26, 2
          %s1051 = sadd.s32 %s1049, %s1050
          %s1052 = smul.addr %s1051, 128
          %s1053 = scalar_lea.hbm %s4, %s1052
          %s1055 = sshll.u32 %s1042, 4
          %s1056 = int_to_ptr.vmem [resolvable:$true] %s1055
          %1058 = dma.vmem_to_hbm [thread:$0]  %s1056, 256, %s1053, %s1039
        $region48: #{tpu_custom_call.1} parent=35 // pred_fallthru
          _
      $region36: #{tpu_custom_call.1} parent=5 // pred_fallthru
        _
      %p1059 = scmp.le.s32.totalorder 2, %s17
      // Predicated region
      $region49: #{tpu_custom_call.1} parent=5 // pred_check
        %p1060 = pneg %p1059
      $region50: #{tpu_custom_call.1} parent=5 // pred_check_branch
        %1062 = sbr.rel (%p1060) target = $region52
      $region51: #{tpu_custom_call.1} parent=5 // pred_region
        %s1063 = ssub.s32 %s17, 2
        // Predicated region
        $region53: #{tpu_custom_call.1} parent=51 // pred_check
          %p1064 = pneg %p161
        $region54: #{tpu_custom_call.1} parent=51 // pred_check_branch
          %1066 = sbr.rel (%p1064) target = $region56
        $region55: #{tpu_custom_call.1} parent=51 // pred_region
          %s1067 = sand.u32 %s146, 1
          %s1068 = scalar_lea.sflag [#allocation4], %s1067
          %s1069 = sand.u32 %s146, 1
          %s1070 = smul.addr %s1069, 16
          %s1071 = scalar_lea.vmem [#allocation7], %s1070
          %1072 = dma.done %s1068, 256
        $region56: #{tpu_custom_call.1} parent=51 // pred_fallthru
          _
      $region52: #{tpu_custom_call.1} parent=5 // pred_fallthru
        _
    $region6: #{tpu_custom_call.1} parent=1 // loop_footer
      %s21 = sadd.s32 1, %s17
    $region7: #{tpu_custom_call.1} parent=1 // loop_footer_branch
      %16 = sbr.rel target = $region3
    $region8: #{tpu_custom_call.1} parent=1 // loop_exit
      _
    %1073 = vsyncpa [#allocation3], 1
    %s1074 = scalar_lea.sflag [#allocation3], 1
    %1075 = vsyncpa %s1074, 1
    %1076 = vsyncpa [#allocation6], 1
    %s1077 = scalar_lea.sflag [#allocation6], 1
    %1078 = vsyncpa %s1077, 1
    %1079 = vsyncpa [#allocation4], 1
    %s1080 = scalar_lea.sflag [#allocation4], 1
    %1081 = vsyncpa %s1080, 1

</llo_original>
